<compile_context>
chip_gen: v7x
topology: tpu7x:2x2x1
jax: 0.10.0
libtpu: 0.0.40
codegen_flags: <defaults>
</compile_context>

<pallas_src>
import functools

import jax
import jax.numpy as jnp
from jax.experimental import pallas as pl
from jax.experimental.pallas import tpu as pltpu

_LANE = 128          # lane width (last dim)
_BATCH_ALIGN = 32    # sublane tile for int8 storage (also satisfies f32's 8)


def _round_up(x, m):
    return (x + m - 1) // m * m


def _vmem_capacity_bytes():
    """Physical per-core VMEM; conservative v7x default (64 MiB) if query fails."""
    try:
        cap = getattr(pltpu.get_tpu_info(), "vmem_capacity_bytes", None)
        if cap:
            return int(cap)
    except Exception:
        pass
    return 64 << 20


def _block_bytes(tB, Np, K):
    """Double-buffered VMEM footprint of one grid step's pipelined blocks."""
    in_bytes = (K + 2) * tB * Np          # int8: k flip codes + v + p0
    in_bytes += tB * K * 4                # f32 acceptance uniforms
    in_bytes += 8 * Np * 4                # f32 J row (sublane-padded layout)
    out_bytes = 2 * tB * Np * 4           # f32: 2*v-1 and vn
    return 2 * (in_bytes + out_bytes)


def _choose_batch_tile(B, Np, K, budget, cap):
    B_aligned = _round_up(B, _BATCH_ALIGN)
    # Aim for >= 4 grid steps when the batch allows: keeps both v7x TensorCores
    # busy and gives the double-buffered DMA something to overlap with.
    target_tiles = max(1, min(4, B_aligned // _BATCH_ALIGN))
    tB = _round_up(-(-B_aligned // target_tiles), _BATCH_ALIGN)
    tB = min(tB, cap, B_aligned)
    while tB > _BATCH_ALIGN and _block_bytes(tB, Np, K) > budget:
        tB = max(_BATCH_ALIGN, (tB // 2) // _BATCH_ALIGN * _BATCH_ALIGN)
    return tB


def _pad_last2(x, rows, cols, fill):
    """Zero-cost-if-unneeded pad of the last two dims up to (rows, cols)."""
    pr, pc = rows - x.shape[-2], cols - x.shape[-1]
    if pr == 0 and pc == 0:
        return x
    cfg = [(0, 0)] * (x.ndim - 2) + [(0, pr), (0, pc)]
    return jnp.pad(x, cfg, constant_values=fill)


def _rbm_kernel(k_steps, v_ref, p0_ref, code_ref, u_ref, j_ref, vpos_ref, vn_ref):
    vspin = 2.0 * v_ref[...].astype(jnp.float32) - 1.0   # int8 {0,1} -> f32 {-1,+1}
    vpos_ref[...] = vspin                                 # first output: 2*v - 1

    vn = vspin                                            # MH chain state (spins)
    # Coupling folded into the carried neighbour-product state:
    #   q[i] = J[i] * vn[i] * vn[(i+1)%N]   (J zero-padded -> padded lanes are 0)
    q = j_ref[...] * p0_ref[...].astype(jnp.float32)
    u_all = u_ref[...]                                    # (tB, K) acceptance uniforms

    # k is a small static hyper-parameter -> unrolled.
    # TODO(synk): for k >> 16 switch to lax.fori_loop carrying (vn, q) and pack
    # four 2-bit flip codes per int8 to cut the dominant k-byte/elem HBM term.
    for step in range(k_steps):
        cf = code_ref[step].astype(jnp.float32)      # packed flip code in {-2,-1,1,2}
        change = jnp.where(cf > 0.0, 1.0, -1.0)      # proposal flip (+/-1)
        cpar = jnp.abs(cf) * 2.0 - 3.0               # change[i]*change[(i+1)%N]

        t = cpar * q                                 # reused: dE term AND q update
        # E(vholder) - E(vn) = sum_i J[i]*p[i]*(1 - cpar[i]) = sum_i (q[i] - t[i])
        neg_ediff = jnp.sum(q - t, axis=1, keepdims=True)
        prob = jnp.exp(-jnp.maximum(neg_ediff, 0.0))           # (tB, 1)
        accept = u_all[:, step:step + 1] < prob                # bernoulli(prob) per row
        accf = jnp.broadcast_to(accept, vn.shape)              # hoisted (used twice)

        vn = jnp.where(accf, change * vn, vn)
        q = jnp.where(accf, t, q)                              # keep q = J*p in sync

    vn_ref[...] = vn


def rbm_forward(v, J, change, u, *, k_steps, batch_tile=None):
    """v: (B,N) f32/int in {0,1}; J: (N,) f32; change: (k,B,N) in {-1,+1};
    u: (k,B) f32 uniforms in [0,1).  Returns (2*v-1, vn), both (B,N) f32.
    `batch_tile` (optional) must be a multiple of 32."""
    B, N = v.shape
    assert change.shape == (k_steps, B, N) and u.shape == (k_steps, B)

    Np = _round_up(N, _LANE)

    vmem_cap = _vmem_capacity_bytes()
    large_vmem = vmem_cap >= (96 << 20)                  # v5e / v6e (128 MiB parts)
    block_budget = (90 << 20) if large_vmem else (40 << 20)
    tile_cap = 512 if large_vmem else 256

    if batch_tile is None:
        tB = _choose_batch_tile(B, Np, k_steps, block_budget, tile_cap)
    else:
        assert batch_tile % _BATCH_ALIGN == 0, "batch_tile must be a multiple of 32"
        tB = batch_tile
    if _block_bytes(tB, Np, k_steps) > block_budget:
        # TODO(synk): add a lane-dimension (spin) grid axis for very large N*k.
        raise ValueError("per-step blocks exceed the VMEM budget; reduce k or N")

    B_pad = _round_up(B, tB)
    grid = (B_pad // tB,)

    # ---- host-side prep (plain JAX): periodic wrap + int8 packing ----
    vf = v.astype(jnp.float32)
    change = change.astype(jnp.float32)
    vspin = 2.0 * vf - 1.0
    p0 = vspin * jnp.roll(vspin, -1, axis=-1)            # vn[i]*vn[(i+1)%N] in {-1,+1}
    cpar = change * jnp.roll(change, -1, axis=-1)        # change[i]*change[(i+1)%N]
    # Pack flip and its neighbour parity into one int8: {-2,-1,1,2}.
    code = (change * (1.5 + 0.5 * cpar)).astype(jnp.int8)

    v_p = _pad_last2(v.astype(jnp.int8), B_pad, Np, 0)
    p0_p = _pad_last2(p0.astype(jnp.int8), B_pad, Np, 1)
    code_p = _pad_last2(code, B_pad, Np, 1)
    u_p = _pad_last2(u.T.astype(jnp.float32), B_pad, k_steps, 0.5)    # (B_pad, k)
    j_p = jnp.zeros((1, Np), jnp.float32).at[0, :N].set(J.astype(jnp.float32))

    est = _block_bytes(tB, Np, k_steps)
    vmem_limit = int(min(vmem_cap - (4 << 20),
                         max(32 << 20, int(est * 1.3) + (8 << 20))))

    cost = pl.CostEstimate(
        flops=int((10 * k_steps + 4) * B_pad * Np),
        transcendentals=int(k_steps * B_pad),
        bytes_accessed=int((k_steps + 2) * B_pad * Np           # int8 inputs
                           + 4 * k_steps * B_pad + 4 * Np       # uniforms + J
                           + 8 * B_pad * Np))                   # two f32 outputs

    kernel = functools.partial(_rbm_kernel, k_steps)
    vpos_p, vn_p = pl.pallas_call(
        kernel,
        out_shape=(jax.ShapeDtypeStruct((B_pad, Np), jnp.float32),
                   jax.ShapeDtypeStruct((B_pad, Np), jnp.float32)),
        grid_spec=pltpu.PrefetchScalarGridSpec(
            num_scalar_prefetch=0,
            grid=grid,
            in_specs=[
                pl.BlockSpec((tB, Np), lambda b: (b, 0)),               # v   (int8)
                pl.BlockSpec((tB, Np), lambda b: (b, 0)),               # p0  (int8)
                pl.BlockSpec((k_steps, tB, Np), lambda b: (0, b, 0)),   # codes (int8)
                pl.BlockSpec((tB, k_steps), lambda b: (b, 0)),          # uniforms
                pl.BlockSpec((1, Np), lambda b: (0, 0)),                # J row
            ],
            out_specs=(
                pl.BlockSpec((tB, Np), lambda b: (b, 0)),               # 2*v - 1
                pl.BlockSpec((tB, Np), lambda b: (b, 0)),               # vn
            ),
        ),
        compiler_params=pltpu.CompilerParams(
            dimension_semantics=("parallel",),
            vmem_limit_bytes=vmem_limit,
        ),
        cost_estimate=cost,
    )(v_p, p0_p, code_p, u_p, j_p)

    return vpos_p[:B, :N], vn_p[:B, :N]


def rbm_forward_ref(v, J, change, u, *, k_steps):
    """Pure-JAX reference written exactly like the PyTorch module (two full
    energy evaluations per MH step over the periodic 1-D lattice)."""
    j_row = J.reshape(1, -1).astype(jnp.float32)

    def energy(s):   # E[b] = -sum_i J[i]*s[b,i]*s[b,(i+1)%N]
        return -jnp.sum(j_row * s * jnp.roll(s, -1, axis=1), axis=1, keepdims=True)

    vn = 2.0 * v - 1.0
    for step in range(k_steps):
        vholder = change[step] * vn
        neg_ediff = -(energy(vn) - energy(vholder))
        prob = jnp.exp(-jnp.maximum(neg_ediff, 0.0))
        accept = u[step].reshape(-1, 1) < prob
        vn = jnp.where(accept, vholder, vn)
    return 2.0 * v - 1.0, vn


if __name__ == "__main__":
    key = jax.random.PRNGKey(0)

    def make_inputs(k, B, N, K):
        kv, kj, kc, ku = jax.random.split(k, 4)
        v = jax.random.bernoulli(kv, 0.5, (B, N)).astype(jnp.float32)
        J = jax.random.uniform(kj, (N,), dtype=jnp.float32)      # torch.rand(n_vis)
        change = 2.0 * jax.random.randint(kc, (K, B, N), 0, 2).astype(jnp.float32) - 1.0
        u = jax.random.uniform(ku, (K, B), dtype=jnp.float32)    # backs torch.bernoulli
        return v, J, change, u

    k1, k2 = jax.random.split(key)

    # Case 1: small module-sized problem (batch=2, n_vis=16 spins, k=4 MH steps).
    v, J, change, u = make_inputs(k1, B=2, N=16, K=4)
    vpos, vn = rbm_forward(v, J, change, u, k_steps=4)
    jax.block_until_ready((vpos, vn))
    vpos_r, vn_r = rbm_forward_ref(v, J, change, u, k_steps=4)
    assert vpos.shape == (2, 16) and vn.shape == (2, 16)
    assert jnp.allclose(vpos, vpos_r), "2*v-1 mismatch (case 1)"
    assert jnp.allclose(vn, vn_r), "Metropolis-Hastings chain mismatch (case 1)"

    # Case 2: exercises batch padding and a multi-block "parallel" batch grid.
    v, J, change, u = make_inputs(k2, B=70, N=16, K=3)
    vpos, vn = rbm_forward(v, J, change, u, k_steps=3, batch_tile=32)
    jax.block_until_ready((vpos, vn))
    vpos_r, vn_r = rbm_forward_ref(v, J, change, u, k_steps=3)
    assert jnp.allclose(vpos, vpos_r), "2*v-1 mismatch (case 2)"
    assert jnp.allclose(vn, vn_r), "Metropolis-Hastings chain mismatch (case 2)"

    print("KERNEL_OK")
</pallas_src>

<mosaic_0001>
module attributes {stable_mosaic.version = 11 : i64} {
  func.func @_rbm_kernel(%arg0: i32, %arg1: memref<32x128xi8, #tpu.memory_space<vmem>>, %arg2: memref<32x128xi8, #tpu.memory_space<vmem>>, %arg3: memref<4x32x128xi8, #tpu.memory_space<vmem>>, %arg4: memref<32x4xf32, #tpu.memory_space<vmem>>, %arg5: memref<1x128xf32, #tpu.memory_space<vmem>>, %arg6: memref<32x128xf32, #tpu.memory_space<vmem>>, %arg7: memref<32x128xf32, #tpu.memory_space<vmem>>) attributes {dimension_semantics = [#tpu.dimension_semantics<parallel>], iteration_bounds = array<i64: 1>, scalar_prefetch = 0 : i64, scratch_operands = 0 : i64, tpu.core_type = #tpu.core_type<tc>, window_params = [{transform_indices = @transform_0, window_bounds = array<i64: 32, 128>}, {transform_indices = @transform_1, window_bounds = array<i64: 32, 128>}, {transform_indices = @transform_2, window_bounds = array<i64: 4, 32, 128>}, {transform_indices = @transform_3, window_bounds = array<i64: 32, 4>}, {pipeline_mode = #tpu.pipeline_mode<synchronous>, transform_indices = @transform_4, window_bounds = array<i64: 1, 128>}, {transform_indices = @transform_5, window_bounds = array<i64: 32, 128>}, {transform_indices = @transform_6, window_bounds = array<i64: 32, 128>}]} {
    %c0 = arith.constant 0 : index
    %c0_0 = arith.constant 0 : index
    %0 = vector.load %arg1[%c0, %c0_0] : memref<32x128xi8, #tpu.memory_space<vmem>>, vector<32x128xi8>
    %1 = arith.sitofp %0 : vector<32x128xi8> to vector<32x128xf32>
    %cst = arith.constant 2.000000e+00 : f32
    %2 = vector.broadcast %cst : f32 to vector<32x128xf32>
    %3 = arith.mulf %2, %1 : vector<32x128xf32>
    %cst_1 = arith.constant 1.000000e+00 : f32
    %4 = vector.broadcast %cst_1 : f32 to vector<32x128xf32>
    %5 = arith.subf %3, %4 : vector<32x128xf32>
    %c0_2 = arith.constant 0 : index
    %c0_3 = arith.constant 0 : index
    %6 = vector.load %arg6[%c0_2, %c0_3] : memref<32x128xf32, #tpu.memory_space<vmem>>, vector<32x128xf32>
    tpu.vector_store %arg6[%c0_2, %c0_3], %5 {strides = array<i32>} : memref<32x128xf32, #tpu.memory_space<vmem>>, vector<32x128xf32>,
    %c0_4 = arith.constant 0 : index
    %c0_5 = arith.constant 0 : index
    %7 = vector.load %arg5[%c0_4, %c0_5] : memref<1x128xf32, #tpu.memory_space<vmem>>, vector<1x128xf32>
    %c0_6 = arith.constant 0 : index
    %c0_7 = arith.constant 0 : index
    %8 = vector.load %arg2[%c0_6, %c0_7] : memref<32x128xi8, #tpu.memory_space<vmem>>, vector<32x128xi8>
    %9 = arith.sitofp %8 : vector<32x128xi8> to vector<32x128xf32>
    %10 = vector.broadcast %7 : vector<1x128xf32> to vector<32x128xf32>
    %11 = arith.mulf %10, %9 : vector<32x128xf32>
    %c0_8 = arith.constant 0 : index
    %c0_9 = arith.constant 0 : index
    %12 = vector.load %arg4[%c0_8, %c0_9] : memref<32x4xf32, #tpu.memory_space<vmem>>, vector<32x4xf32>
    %c0_10 = arith.constant 0 : index
    %c0_11 = arith.constant 0 : index
    %c0_12 = arith.constant 0 : index
    %13 = vector.load %arg3[%c0_10, %c0_11, %c0_12] : memref<4x32x128xi8, #tpu.memory_space<vmem>>, vector<1x32x128xi8>
    %14 = vector.shape_cast %13 : vector<1x32x128xi8> to vector<32x128xi8>
    %15 = arith.sitofp %14 : vector<32x128xi8> to vector<32x128xf32>
    %cst_13 = arith.constant 0.000000e+00 : f32
    %16 = vector.broadcast %cst_13 : f32 to vector<32x128xf32>
    %17 = arith.cmpf ogt, %15, %16 : vector<32x128xf32>
    %cst_14 = arith.constant 1.000000e+00 : f32
    %cst_15 = arith.constant -1.000000e+00 : f32
    %18 = vector.broadcast %cst_14 : f32 to vector<32x128xf32>
    %19 = vector.broadcast %cst_15 : f32 to vector<32x128xf32>
    %20 = arith.select %17, %18, %19 : vector<32x128xi1>, vector<32x128xf32>
    %21 = math.absf %15 : vector<32x128xf32>
    %cst_16 = arith.constant 2.000000e+00 : f32
    %22 = vector.broadcast %cst_16 : f32 to vector<32x128xf32>
    %23 = arith.mulf %21, %22 : vector<32x128xf32>
    %cst_17 = arith.constant 3.000000e+00 : f32
    %24 = vector.broadcast %cst_17 : f32 to vector<32x128xf32>
    %25 = arith.subf %23, %24 : vector<32x128xf32>
    %26 = arith.mulf %25, %11 : vector<32x128xf32>
    %27 = arith.subf %11, %26 : vector<32x128xf32>
    %cst_18 = arith.constant dense<0.000000e+00> : vector<32xf32>
    %28 = vector.multi_reduction <add>, %27, %cst_18 [1] : vector<32x128xf32> to vector<32xf32>
    %29 = vector.shape_cast %28 : vector<32xf32> to vector<32x1xf32>
    %cst_19 = arith.constant 0.000000e+00 : f32
    %30 = vector.broadcast %cst_19 : f32 to vector<32x1xf32>
    %31 = arith.maximumf %29, %30 : vector<32x1xf32>
    %cst_20 = arith.constant 0.000000e+00 : f32
    %32 = vector.broadcast %cst_20 : f32 to vector<32x1xf32>
    %33 = arith.subf %32, %31 : vector<32x1xf32>
    %34 = math.exp %33 : vector<32x1xf32>
    %35 = vector.extract_strided_slice %12 {offsets = [0, 0], sizes = [32, 1], strides = [1, 1]} : vector<32x4xf32> to vector<32x1xf32>
    %36 = arith.cmpf olt, %35, %34 : vector<32x1xf32>
    %37 = vector.shape_cast %36 : vector<32x1xi1> to vector<32x1xi1>
    %38 = vector.broadcast %37 : vector<32x1xi1> to vector<32x128xi1>
    %39 = arith.mulf %20, %5 : vector<32x128xf32>
    %40 = arith.select %38, %39, %5 : vector<32x128xi1>, vector<32x128xf32>
    %41 = arith.select %38, %26, %11 : vector<32x128xi1>, vector<32x128xf32>
    %c1 = arith.constant 1 : index
    %c0_21 = arith.constant 0 : index
    %c0_22 = arith.constant 0 : index
    %42 = vector.load %arg3[%c1, %c0_21, %c0_22] : memref<4x32x128xi8, #tpu.memory_space<vmem>>, vector<1x32x128xi8>
    %43 = vector.shape_cast %42 : vector<1x32x128xi8> to vector<32x128xi8>
    %44 = arith.sitofp %43 : vector<32x128xi8> to vector<32x128xf32>
    %cst_23 = arith.constant 0.000000e+00 : f32
    %45 = vector.broadcast %cst_23 : f32 to vector<32x128xf32>
    %46 = arith.cmpf ogt, %44, %45 : vector<32x128xf32>
    %cst_24 = arith.constant 1.000000e+00 : f32
    %cst_25 = arith.constant -1.000000e+00 : f32
    %47 = vector.broadcast %cst_24 : f32 to vector<32x128xf32>
    %48 = vector.broadcast %cst_25 : f32 to vector<32x128xf32>
    %49 = arith.select %46, %47, %48 : vector<32x128xi1>, vector<32x128xf32>
    %50 = math.absf %44 : vector<32x128xf32>
    %cst_26 = arith.constant 2.000000e+00 : f32
    %51 = vector.broadcast %cst_26 : f32 to vector<32x128xf32>
    %52 = arith.mulf %50, %51 : vector<32x128xf32>
    %cst_27 = arith.constant 3.000000e+00 : f32
    %53 = vector.broadcast %cst_27 : f32 to vector<32x128xf32>
    %54 = arith.subf %52, %53 : vector<32x128xf32>
    %55 = arith.mulf %54, %41 : vector<32x128xf32>
    %56 = arith.subf %41, %55 : vector<32x128xf32>
    %cst_28 = arith.constant dense<0.000000e+00> : vector<32xf32>
    %57 = vector.multi_reduction <add>, %56, %cst_28 [1] : vector<32x128xf32> to vector<32xf32>
    %58 = vector.shape_cast %57 : vector<32xf32> to vector<32x1xf32>
    %cst_29 = arith.constant 0.000000e+00 : f32
    %59 = vector.broadcast %cst_29 : f32 to vector<32x1xf32>
    %60 = arith.maximumf %58, %59 : vector<32x1xf32>
    %cst_30 = arith.constant 0.000000e+00 : f32
    %61 = vector.broadcast %cst_30 : f32 to vector<32x1xf32>
    %62 = arith.subf %61, %60 : vector<32x1xf32>
    %63 = math.exp %62 : vector<32x1xf32>
    %64 = vector.extract_strided_slice %12 {offsets = [0, 1], sizes = [32, 1], strides = [1, 1]} : vector<32x4xf32> to vector<32x1xf32>
    %65 = arith.cmpf olt, %64, %63 : vector<32x1xf32>
    %66 = vector.shape_cast %65 : vector<32x1xi1> to vector<32x1xi1>
    %67 = vector.broadcast %66 : vector<32x1xi1> to vector<32x128xi1>
    %68 = arith.mulf %49, %40 : vector<32x128xf32>
    %69 = arith.select %67, %68, %40 : vector<32x128xi1>, vector<32x128xf32>
    %70 = arith.select %67, %55, %41 : vector<32x128xi1>, vector<32x128xf32>
    %c2 = arith.constant 2 : index
    %c0_31 = arith.constant 0 : index
    %c0_32 = arith.constant 0 : index
    %71 = vector.load %arg3[%c2, %c0_31, %c0_32] : memref<4x32x128xi8, #tpu.memory_space<vmem>>, vector<1x32x128xi8>
    %72 = vector.shape_cast %71 : vector<1x32x128xi8> to vector<32x128xi8>
    %73 = arith.sitofp %72 : vector<32x128xi8> to vector<32x128xf32>
    %cst_33 = arith.constant 0.000000e+00 : f32
    %74 = vector.broadcast %cst_33 : f32 to vector<32x128xf32>
    %75 = arith.cmpf ogt, %73, %74 : vector<32x128xf32>
    %cst_34 = arith.constant 1.000000e+00 : f32
    %cst_35 = arith.constant -1.000000e+00 : f32
    %76 = vector.broadcast %cst_34 : f32 to vector<32x128xf32>
    %77 = vector.broadcast %cst_35 : f32 to vector<32x128xf32>
    %78 = arith.select %75, %76, %77 : vector<32x128xi1>, vector<32x128xf32>
    %79 = math.absf %73 : vector<32x128xf32>
    %cst_36 = arith.constant 2.000000e+00 : f32
    %80 = vector.broadcast %cst_36 : f32 to vector<32x128xf32>
    %81 = arith.mulf %79, %80 : vector<32x128xf32>
    %cst_37 = arith.constant 3.000000e+00 : f32
    %82 = vector.broadcast %cst_37 : f32 to vector<32x128xf32>
    %83 = arith.subf %81, %82 : vector<32x128xf32>
    %84 = arith.mulf %83, %70 : vector<32x128xf32>
    %85 = arith.subf %70, %84 : vector<32x128xf32>
    %cst_38 = arith.constant dense<0.000000e+00> : vector<32xf32>
    %86 = vector.multi_reduction <add>, %85, %cst_38 [1] : vector<32x128xf32> to vector<32xf32>
    %87 = vector.shape_cast %86 : vector<32xf32> to vector<32x1xf32>
    %cst_39 = arith.constant 0.000000e+00 : f32
    %88 = vector.broadcast %cst_39 : f32 to vector<32x1xf32>
    %89 = arith.maximumf %87, %88 : vector<32x1xf32>
    %cst_40 = arith.constant 0.000000e+00 : f32
    %90 = vector.broadcast %cst_40 : f32 to vector<32x1xf32>
    %91 = arith.subf %90, %89 : vector<32x1xf32>
    %92 = math.exp %91 : vector<32x1xf32>
    %93 = vector.extract_strided_slice %12 {offsets = [0, 2], sizes = [32, 1], strides = [1, 1]} : vector<32x4xf32> to vector<32x1xf32>
    %94 = arith.cmpf olt, %93, %92 : vector<32x1xf32>
    %95 = vector.shape_cast %94 : vector<32x1xi1> to vector<32x1xi1>
    %96 = vector.broadcast %95 : vector<32x1xi1> to vector<32x128xi1>
    %97 = arith.mulf %78, %69 : vector<32x128xf32>
    %98 = arith.select %96, %97, %69 : vector<32x128xi1>, vector<32x128xf32>
    %99 = arith.select %96, %84, %70 : vector<32x128xi1>, vector<32x128xf32>
    %c3 = arith.constant 3 : index
    %c0_41 = arith.constant 0 : index
    %c0_42 = arith.constant 0 : index
    %100 = vector.load %arg3[%c3, %c0_41, %c0_42] : memref<4x32x128xi8, #tpu.memory_space<vmem>>, vector<1x32x128xi8>
    %101 = vector.shape_cast %100 : vector<1x32x128xi8> to vector<32x128xi8>
    %102 = arith.sitofp %101 : vector<32x128xi8> to vector<32x128xf32>
    %cst_43 = arith.constant 0.000000e+00 : f32
    %103 = vector.broadcast %cst_43 : f32 to vector<32x128xf32>
    %104 = arith.cmpf ogt, %102, %103 : vector<32x128xf32>
    %cst_44 = arith.constant 1.000000e+00 : f32
    %cst_45 = arith.constant -1.000000e+00 : f32
    %105 = vector.broadcast %cst_44 : f32 to vector<32x128xf32>
    %106 = vector.broadcast %cst_45 : f32 to vector<32x128xf32>
    %107 = arith.select %104, %105, %106 : vector<32x128xi1>, vector<32x128xf32>
    %108 = math.absf %102 : vector<32x128xf32>
    %cst_46 = arith.constant 2.000000e+00 : f32
    %109 = vector.broadcast %cst_46 : f32 to vector<32x128xf32>
    %110 = arith.mulf %108, %109 : vector<32x128xf32>
    %cst_47 = arith.constant 3.000000e+00 : f32
    %111 = vector.broadcast %cst_47 : f32 to vector<32x128xf32>
    %112 = arith.subf %110, %111 : vector<32x128xf32>
    %113 = arith.mulf %112, %99 : vector<32x128xf32>
    %114 = arith.subf %99, %113 : vector<32x128xf32>
    %cst_48 = arith.constant dense<0.000000e+00> : vector<32xf32>
    %115 = vector.multi_reduction <add>, %114, %cst_48 [1] : vector<32x128xf32> to vector<32xf32>
    %116 = vector.shape_cast %115 : vector<32xf32> to vector<32x1xf32>
    %cst_49 = arith.constant 0.000000e+00 : f32
    %117 = vector.broadcast %cst_49 : f32 to vector<32x1xf32>
    %118 = arith.maximumf %116, %117 : vector<32x1xf32>
    %cst_50 = arith.constant 0.000000e+00 : f32
    %119 = vector.broadcast %cst_50 : f32 to vector<32x1xf32>
    %120 = arith.subf %119, %118 : vector<32x1xf32>
    %121 = math.exp %120 : vector<32x1xf32>
    %122 = vector.extract_strided_slice %12 {offsets = [0, 3], sizes = [32, 1], strides = [1, 1]} : vector<32x4xf32> to vector<32x1xf32>
    %123 = arith.cmpf olt, %122, %121 : vector<32x1xf32>
    %124 = vector.shape_cast %123 : vector<32x1xi1> to vector<32x1xi1>
    %125 = vector.broadcast %124 : vector<32x1xi1> to vector<32x128xi1>
    %126 = arith.mulf %107, %98 : vector<32x128xf32>
    %127 = arith.select %125, %126, %98 : vector<32x128xi1>, vector<32x128xf32>
    %c0_51 = arith.constant 0 : index
    %c0_52 = arith.constant 0 : index
    %128 = vector.load %arg7[%c0_51, %c0_52] : memref<32x128xf32, #tpu.memory_space<vmem>>, vector<32x128xf32>
    tpu.vector_store %arg7[%c0_51, %c0_52], %127 {strides = array<i32>} : memref<32x128xf32, #tpu.memory_space<vmem>>, vector<32x128xf32>,
    return
  }
  func.func @transform_0(%arg0: i32) -> (i32, i32) {
    %c0_i32 = arith.constant 0 : i32
    %c0_i32_0 = arith.constant 0 : i32
    return %arg0, %c0_i32 : i32, i32
  }
  func.func @transform_1(%arg0: i32) -> (i32, i32) {
    %c0_i32 = arith.constant 0 : i32
    %c0_i32_0 = arith.constant 0 : i32
    return %arg0, %c0_i32 : i32, i32
  }
  func.func @transform_2(%arg0: i32) -> (i32, i32, i32) {
    %c0_i32 = arith.constant 0 : i32
    %c0_i32_0 = arith.constant 0 : i32
    %c0_i32_1 = arith.constant 0 : i32
    return %c0_i32, %arg0, %c0_i32_0 : i32, i32, i32
  }
  func.func @transform_3(%arg0: i32) -> (i32, i32) {
    %c0_i32 = arith.constant 0 : i32
    %c0_i32_0 = arith.constant 0 : i32
    return %arg0, %c0_i32 : i32, i32
  }
  func.func @transform_4(%arg0: i32) -> (i32, i32) {
    %c0_i32 = arith.constant 0 : i32
    %c0_i32_0 = arith.constant 0 : i32
    %c0_i32_1 = arith.constant 0 : i32
    return %c0_i32, %c0_i32_0 : i32, i32
  }
  func.func @transform_5(%arg0: i32) -> (i32, i32) {
    %c0_i32 = arith.constant 0 : i32
    %c0_i32_0 = arith.constant 0 : i32
    return %arg0, %c0_i32 : i32, i32
  }
  func.func @transform_6(%arg0: i32) -> (i32, i32) {
    %c0_i32 = arith.constant 0 : i32
    %c0_i32_0 = arith.constant 0 : i32
    return %arg0, %c0_i32 : i32, i32
  }
}

</mosaic_0001>

<llo_original>
// kernel: tpu_custom_call.1
$region0: #{tpu_custom_call.1}
  #allocation0 [shape = 'u32[]', space=smem, size = 0x4, offset = 0x4, fixed_abs, tag = 'smem constant byte address 0x4 - core index']
  #allocation1 [shape = 'u32[144,128]{1,0:T(1,128)}', space=vmem, size = 0x12000, scoped, tag = 'internal scratch']
  %s0 = inlined_call_operand.vmem [shape: s8[32,128], index: 0, kind: input, shape index: {}]
  %s1 = inlined_call_operand.hbm [shape: s8[32,128], index: 1, kind: input, shape index: {}]
  %s2 = inlined_call_operand.vmem [shape: s8[4,32,128], index: 2, kind: input, shape index: {}]
  %s3 = inlined_call_operand.vmem [shape: f32[32,4], index: 3, kind: input, shape index: {}]
  %s4 = inlined_call_operand.vmem [shape: f32[1,128], index: 4, kind: input, shape index: {}]
  %s5 = inlined_call_operand.hbm [shape: f32[32,128], index: 5, kind: output, shape index: {0}]
  %s6 = inlined_call_operand.hbm [shape: f32[32,128], index: 6, kind: output, shape index: {1}]
  %7 = xla_tuple %s5, %s6
  %s8 = sld [smem:[#allocation0]]
  $region42: #{tpu_custom_call.1} parent=0
    _
  %s10 = ssub.s32 1, %s8
  %s11 = scalar_select 0, %s10, %s8
  $region1: #{tpu_custom_call.1} parent=0
    #allocation2 [shape = 'u8[4096]{0}', space=vmem, size = 0x1000, scoped, tag = 'input window, operand 1, single buffered']
    #allocation3 [shape = 's32[1]{0}', space=sflag, size = 0x4, scoped, tag = 'scoped memory for tpu_custom_call.1']
    #allocation4 [shape = 's32[1]{0}', space=sflag, size = 0x4, scoped, tag = 'scoped memory for tpu_custom_call.1']
    #allocation5 [shape = 'u8[16384]{0}', space=vmem, size = 0x4000, scoped, tag = 'output window, operand 0, single buffered']
    #allocation6 [shape = 'u8[16384]{0}', space=vmem, size = 0x4000, scoped, tag = 'output window, operand 1, single buffered']
    #allocation7 [shape = 's32[1]{0}', space=sflag, size = 0x4, scoped, tag = 'scoped memory for tpu_custom_call.1']
    %12 = vsyncpa [#allocation3], 0
    %13 = vsyncpa [#allocation4], 0
    %14 = vsyncpa [#allocation7], 0
    // Predicated region
    $region2: #{tpu_custom_call.1} parent=1 // pred_check
      _
    $region3: #{tpu_custom_call.1} parent=1 // pred_check_branch
      %16 = sbr.rel (0) target = $region5
    $region4: #{tpu_custom_call.1} parent=1 // pred_region
      _
    $region5: #{tpu_custom_call.1} parent=1 // pred_fallthru
      _
    // Predicated region
    $region6: #{tpu_custom_call.1} parent=1 // pred_check
      _
    $region7: #{tpu_custom_call.1} parent=1 // pred_check_branch
      %18 = sbr.rel (0) target = $region9
    $region8: #{tpu_custom_call.1} parent=1 // pred_region
      %s20 = ssub.s32 128, 128
      %21 = vsyncadd [#allocation3], %s20
      %s23 = sshll.u32 [#allocation2], 4
      %s24 = int_to_ptr.vmem [resolvable:$true] %s23
      %26 = dma.hbm_to_vmem [thread:$0]  %s1, 128, %s24, [#allocation3]
    $region9: #{tpu_custom_call.1} parent=1 // pred_fallthru
      _
    // Predicated region
    $region10: #{tpu_custom_call.1} parent=1 // pred_check
      _
    $region11: #{tpu_custom_call.1} parent=1 // pred_check_branch
      %28 = sbr.rel (0) target = $region13
    $region12: #{tpu_custom_call.1} parent=1 // pred_region
      _
    $region13: #{tpu_custom_call.1} parent=1 // pred_fallthru
      _
    // Predicated region
    $region14: #{tpu_custom_call.1} parent=1 // pred_check
      _
    $region15: #{tpu_custom_call.1} parent=1 // pred_check_branch
      %30 = sbr.rel (0) target = $region17
    $region16: #{tpu_custom_call.1} parent=1 // pred_region
      _
    $region17: #{tpu_custom_call.1} parent=1 // pred_fallthru
      _
    // Predicated region
    $region18: #{tpu_custom_call.1} parent=1 // pred_check
      _
    $region19: #{tpu_custom_call.1} parent=1 // pred_check_branch
      %32 = sbr.rel (0) target = $region21
    $region20: #{tpu_custom_call.1} parent=1 // pred_region
      _
    $region21: #{tpu_custom_call.1} parent=1 // pred_fallthru
      _
    // Predicated region
    $region22: #{tpu_custom_call.1} parent=1 // pred_check
      _
    $region23: #{tpu_custom_call.1} parent=1 // pred_check_branch
      %34 = sbr.rel (0) target = $region25
    $region24: #{tpu_custom_call.1} parent=1 // pred_region
      %35 = dma.done [#allocation3], 128
    $region25: #{tpu_custom_call.1} parent=1 // pred_fallthru
      _
    %v36 = vld [vmem:[%s0] sm:$0xff]
    %v37 = vunpack.c.0.s8 %v36
    %v38 = vunpack.c.1.s8 %v36
    %v39 = vunpack.c.2.s8 %v36
    %v40 = vunpack.c.3.s8 %v36
    %v41 = vcvt.s32.f32 %v37
    %v42 = vcvt.s32.f32 %v38
    %v43 = vcvt.s32.f32 %v39
    %v44 = vcvt.s32.f32 %v40
    %v45 = vmul.f32 %v41, 2.0
    %v46 = vmul.f32 %v42, 2.0
    %v47 = vmul.f32 %v43, 2.0
    %v48 = vmul.f32 %v44, 2.0
    %v49 = vsub.f32 %v45, 1.0
    %v50 = vsub.f32 %v46, 1.0
    %v51 = vsub.f32 %v47, 1.0
    %v52 = vsub.f32 %v48, 1.0
    %53 = vst [vmem:[#allocation5] sm:$0xff] %v49
    %54 = vst [vmem:[#allocation5 + $0x8] sm:$0xff] %v50
    %55 = vst [vmem:[#allocation5 + $0x10] sm:$0xff] %v51
    %56 = vst [vmem:[#allocation5 + $0x18] sm:$0xff] %v52
    %v57 = vld [vmem:[%s4] sm:$0x1]
    %v58 = vld [vmem:[#allocation2] sm:$0xff]
    %v59 = vunpack.c.0.s8 %v58
    %v60 = vunpack.c.1.s8 %v58
    %v61 = vunpack.c.2.s8 %v58
    %v62 = vunpack.c.3.s8 %v58
    %v63 = vcvt.s32.f32 %v59
    %v64 = vcvt.s32.f32 %v60
    %v65 = vcvt.s32.f32 %v61
    %v66 = vcvt.s32.f32 %v62
    %v68 = vlaneseq
    %v69 = vshrl.u32 %v68, 7
    %v70 = vsub.s32 0, %v69
    %v71 = vrot.slane %v57, %v70
    %v73 = vmul.f32 %v71, %v63
    %v74 = vmul.f32 %v71, %v64
    %v75 = vmul.f32 %v71, %v65
    %v76 = vmul.f32 %v71, %v66
    %v77 = vld [vmem:[%s3] sm:$0xff]
    %v78 = vld [vmem:[%s3 + $0x8] sm:$0xff]
    %v79 = vld [vmem:[%s3 + $0x10] sm:$0xff]
    %v80 = vld [vmem:[%s3 + $0x18] sm:$0xff]
    %v81 = vld [vmem:[%s2] sm:$0xff]
    %v82 = vunpack.c.0.s8 %v81
    %v83 = vunpack.c.1.s8 %v81
    %v84 = vunpack.c.2.s8 %v81
    %v85 = vunpack.c.3.s8 %v81
    %v86 = vcvt.s32.f32 %v82
    %v87 = vcvt.s32.f32 %v83
    %v88 = vcvt.s32.f32 %v84
    %v89 = vcvt.s32.f32 %v85
    %vm90 = vcmp.gt.f32.partialorder %v86, 0.0
    %vm91 = vcmp.gt.f32.partialorder %v87, 0.0
    %vm92 = vcmp.gt.f32.partialorder %v88, 0.0
    %vm93 = vcmp.gt.f32.partialorder %v89, 0.0
    %v94 = vsel %vm90, 1.0, -1.0
    %v95 = vsel %vm91, 1.0, -1.0
    %v96 = vsel %vm92, 1.0, -1.0
    %v97 = vsel %vm93, 1.0, -1.0
    %v98 = vand.u32 2147483647, %v86
    %v99 = vand.u32 2147483647, %v87
    %v100 = vand.u32 2147483647, %v88
    %v101 = vand.u32 2147483647, %v89
    %v102 = vmul.f32 %v98, 2.0
    %v103 = vmul.f32 %v99, 2.0
    %v104 = vmul.f32 %v100, 2.0
    %v105 = vmul.f32 %v101, 2.0
    %v106 = vsub.f32 %v102, 3.0
    %v107 = vsub.f32 %v103, 3.0
    %v108 = vsub.f32 %v104, 3.0
    %v109 = vsub.f32 %v105, 3.0
    %v110 = vmul.f32 %v106, %v73
    %v111 = vmul.f32 %v107, %v74
    %v112 = vmul.f32 %v108, %v75
    %v113 = vmul.f32 %v109, %v76
    %v114 = vsub.f32 %v73, %v110
    %v115 = vsub.f32 %v74, %v111
    %v116 = vsub.f32 %v75, %v112
    %v117 = vsub.f32 %v76, %v113
    %118 = vadd.xlane.f32.xlu0 %v114
    %v119 = vpop.xlane.xlu0 %118
    %120 = vadd.xlane.f32.xlu0 %v115
    %v121 = vpop.xlane.xlu0 %120
    %122 = vadd.xlane.f32.xlu0 %v116
    %v123 = vpop.xlane.xlu0 %122
    %124 = vadd.xlane.f32.xlu0 %v117
    %v125 = vpop.xlane.xlu0 %124
    %v126 = vmax.f32 %v119, 0.0
    %v127 = vmax.f32 %v121, 0.0
    %v128 = vmax.f32 %v123, 0.0
    %v129 = vmax.f32 %v125, 0.0
    %v130 = vsub.f32 0.0, %v126
    %v131 = vsub.f32 0.0, %v127
    %v132 = vsub.f32 0.0, %v128
    %v133 = vsub.f32 0.0, %v129
    %v134 = vmul.f32 %v130, 1.442695
    %v135 = vpow.pop %v134
    %v136 = vmul.f32 %v131, 1.442695
    %v137 = vpow.pop %v136
    %v138 = vmul.f32 %v132, 1.442695
    %v139 = vpow.pop %v138
    %v140 = vmul.f32 %v133, 1.442695
    %v141 = vpow.pop %v140
    %vm142 = vcmp.lt.f32.partialorder %v77, %v135
    %vm143 = vcmp.lt.f32.partialorder %v78, %v137
    %vm144 = vcmp.lt.f32.partialorder %v79, %v139
    %vm145 = vcmp.lt.f32.partialorder %v80, %v141
    %v146 = vsel %vm142, 1, 0
    %v147 = vsel %vm143, 1, 0
    %v148 = vsel %vm144, 1, 0
    %v149 = vsel %vm145, 1, 0
    %150 = vset.pattern.permute.xlu0 0
    %151 = vperm.xlu0 %150, %v146
    %v152 = vpop.permute.xlu0 %151
    %153 = vset.pattern.permute.xlu0 0
    %154 = vperm.xlu0 %153, %v147
    %v155 = vpop.permute.xlu0 %154
    %156 = vset.pattern.permute.xlu0 0
    %157 = vperm.xlu0 %156, %v148
    %v158 = vpop.permute.xlu0 %157
    %159 = vset.pattern.permute.xlu0 0
    %160 = vperm.xlu0 %159, %v149
    %v161 = vpop.permute.xlu0 %160
    %vm162 = vcmp.eq.s32.totalorder %v152, 1
    %vm163 = vcmp.eq.s32.totalorder %v155, 1
    %vm164 = vcmp.eq.s32.totalorder %v158, 1
    %vm165 = vcmp.eq.s32.totalorder %v161, 1
    %v166 = vmul.f32 %v94, %v49
    %v167 = vmul.f32 %v95, %v50
    %v168 = vmul.f32 %v96, %v51
    %v169 = vmul.f32 %v97, %v52
    %v170 = vsel %vm162, %v166, %v49
    %v171 = vsel %vm163, %v167, %v50
    %v172 = vsel %vm164, %v168, %v51
    %v173 = vsel %vm165, %v169, %v52
    %v174 = vsel %vm162, %v110, %v73
    %v175 = vsel %vm163, %v111, %v74
    %v176 = vsel %vm164, %v112, %v75
    %v177 = vsel %vm165, %v113, %v76
    %s178 = scalar_lea.vmem %s2, 8
    %v179 = vld [vmem:[%s178] sm:$0xff]
    %v180 = vunpack.c.0.s8 %v179
    %v181 = vunpack.c.1.s8 %v179
    %v182 = vunpack.c.2.s8 %v179
    %v183 = vunpack.c.3.s8 %v179
    %v184 = vcvt.s32.f32 %v180
    %v185 = vcvt.s32.f32 %v181
    %v186 = vcvt.s32.f32 %v182
    %v187 = vcvt.s32.f32 %v183
    %vm188 = vcmp.gt.f32.partialorder %v184, 0.0
    %vm189 = vcmp.gt.f32.partialorder %v185, 0.0
    %vm190 = vcmp.gt.f32.partialorder %v186, 0.0
    %vm191 = vcmp.gt.f32.partialorder %v187, 0.0
    %v192 = vsel %vm188, 1.0, -1.0
    %v193 = vsel %vm189, 1.0, -1.0
    %v194 = vsel %vm190, 1.0, -1.0
    %v195 = vsel %vm191, 1.0, -1.0
    %v196 = vand.u32 2147483647, %v184
    %v197 = vand.u32 2147483647, %v185
    %v198 = vand.u32 2147483647, %v186
    %v199 = vand.u32 2147483647, %v187
    %v200 = vmul.f32 %v196, 2.0
    %v201 = vmul.f32 %v197, 2.0
    %v202 = vmul.f32 %v198, 2.0
    %v203 = vmul.f32 %v199, 2.0
    %v204 = vsub.f32 %v200, 3.0
    %v205 = vsub.f32 %v201, 3.0
    %v206 = vsub.f32 %v202, 3.0
    %v207 = vsub.f32 %v203, 3.0
    %v208 = vmul.f32 %v204, %v174
    %v209 = vmul.f32 %v205, %v175
    %v210 = vmul.f32 %v206, %v176
    %v211 = vmul.f32 %v207, %v177
    %v212 = vsub.f32 %v174, %v208
    %v213 = vsub.f32 %v175, %v209
    %v214 = vsub.f32 %v176, %v210
    %v215 = vsub.f32 %v177, %v211
    %216 = vadd.xlane.f32.xlu0 %v212
    %v217 = vpop.xlane.xlu0 %216
    %218 = vadd.xlane.f32.xlu0 %v213
    %v219 = vpop.xlane.xlu0 %218
    %220 = vadd.xlane.f32.xlu0 %v214
    %v221 = vpop.xlane.xlu0 %220
    %222 = vadd.xlane.f32.xlu0 %v215
    %v223 = vpop.xlane.xlu0 %222
    %v224 = vmax.f32 %v217, 0.0
    %v225 = vmax.f32 %v219, 0.0
    %v226 = vmax.f32 %v221, 0.0
    %v227 = vmax.f32 %v223, 0.0
    %v228 = vsub.f32 0.0, %v224
    %v229 = vsub.f32 0.0, %v225
    %v230 = vsub.f32 0.0, %v226
    %v231 = vsub.f32 0.0, %v227
    %v232 = vmul.f32 %v228, 1.442695
    %v233 = vpow.pop %v232
    %v234 = vmul.f32 %v229, 1.442695
    %v235 = vpow.pop %v234
    %v236 = vmul.f32 %v230, 1.442695
    %v237 = vpow.pop %v236
    %v238 = vmul.f32 %v231, 1.442695
    %v239 = vpow.pop %v238
    %vm240 = vcmp.lt.f32.partialorder %v77, %v233
    %vm241 = vcmp.lt.f32.partialorder %v78, %v235
    %vm242 = vcmp.lt.f32.partialorder %v79, %v237
    %vm243 = vcmp.lt.f32.partialorder %v80, %v239
    %v244 = vsel %vm240, 1, 0
    %v245 = vsel %vm241, 1, 0
    %v246 = vsel %vm242, 1, 0
    %v247 = vsel %vm243, 1, 0
    %248 = vset.pattern.permute.xlu0 1
    %249 = vperm.xlu0 %248, %v244
    %v250 = vpop.permute.xlu0 %249
    %251 = vset.pattern.permute.xlu0 1
    %252 = vperm.xlu0 %251, %v245
    %v253 = vpop.permute.xlu0 %252
    %254 = vset.pattern.permute.xlu0 1
    %255 = vperm.xlu0 %254, %v246
    %v256 = vpop.permute.xlu0 %255
    %257 = vset.pattern.permute.xlu0 1
    %258 = vperm.xlu0 %257, %v247
    %v259 = vpop.permute.xlu0 %258
    %vm260 = vcmp.eq.s32.totalorder %v250, 1
    %vm261 = vcmp.eq.s32.totalorder %v253, 1
    %vm262 = vcmp.eq.s32.totalorder %v256, 1
    %vm263 = vcmp.eq.s32.totalorder %v259, 1
    %v264 = vmul.f32 %v192, %v170
    %v265 = vmul.f32 %v193, %v171
    %v266 = vmul.f32 %v194, %v172
    %v267 = vmul.f32 %v195, %v173
    %v268 = vsel %vm260, %v264, %v170
    %v269 = vsel %vm261, %v265, %v171
    %v270 = vsel %vm262, %v266, %v172
    %v271 = vsel %vm263, %v267, %v173
    %v272 = vsel %vm260, %v208, %v174
    %v273 = vsel %vm261, %v209, %v175
    %v274 = vsel %vm262, %v210, %v176
    %v275 = vsel %vm263, %v211, %v177
    %s276 = scalar_lea.vmem %s2, 16
    %v277 = vld [vmem:[%s276] sm:$0xff]
    %v278 = vunpack.c.0.s8 %v277
    %v279 = vunpack.c.1.s8 %v277
    %v280 = vunpack.c.2.s8 %v277
    %v281 = vunpack.c.3.s8 %v277
    %v282 = vcvt.s32.f32 %v278
    %v283 = vcvt.s32.f32 %v279
    %v284 = vcvt.s32.f32 %v280
    %v285 = vcvt.s32.f32 %v281
    %vm286 = vcmp.gt.f32.partialorder %v282, 0.0
    %vm287 = vcmp.gt.f32.partialorder %v283, 0.0
    %vm288 = vcmp.gt.f32.partialorder %v284, 0.0
    %vm289 = vcmp.gt.f32.partialorder %v285, 0.0
    %v290 = vsel %vm286, 1.0, -1.0
    %v291 = vsel %vm287, 1.0, -1.0
    %v292 = vsel %vm288, 1.0, -1.0
    %v293 = vsel %vm289, 1.0, -1.0
    %v294 = vand.u32 2147483647, %v282
    %v295 = vand.u32 2147483647, %v283
    %v296 = vand.u32 2147483647, %v284
    %v297 = vand.u32 2147483647, %v285
    %v298 = vmul.f32 %v294, 2.0
    %v299 = vmul.f32 %v295, 2.0
    %v300 = vmul.f32 %v296, 2.0
    %v301 = vmul.f32 %v297, 2.0
    %v302 = vsub.f32 %v298, 3.0
    %v303 = vsub.f32 %v299, 3.0
    %v304 = vsub.f32 %v300, 3.0
    %v305 = vsub.f32 %v301, 3.0
    %v306 = vmul.f32 %v302, %v272
    %v307 = vmul.f32 %v303, %v273
    %v308 = vmul.f32 %v304, %v274
    %v309 = vmul.f32 %v305, %v275
    %v310 = vsub.f32 %v272, %v306
    %v311 = vsub.f32 %v273, %v307
    %v312 = vsub.f32 %v274, %v308
    %v313 = vsub.f32 %v275, %v309
    %314 = vadd.xlane.f32.xlu0 %v310
    %v315 = vpop.xlane.xlu0 %314
    %316 = vadd.xlane.f32.xlu0 %v311
    %v317 = vpop.xlane.xlu0 %316
    %318 = vadd.xlane.f32.xlu0 %v312
    %v319 = vpop.xlane.xlu0 %318
    %320 = vadd.xlane.f32.xlu0 %v313
    %v321 = vpop.xlane.xlu0 %320
    %v322 = vmax.f32 %v315, 0.0
    %v323 = vmax.f32 %v317, 0.0
    %v324 = vmax.f32 %v319, 0.0
    %v325 = vmax.f32 %v321, 0.0
    %v326 = vsub.f32 0.0, %v322
    %v327 = vsub.f32 0.0, %v323
    %v328 = vsub.f32 0.0, %v324
    %v329 = vsub.f32 0.0, %v325
    %v330 = vmul.f32 %v326, 1.442695
    %v331 = vpow.pop %v330
    %v332 = vmul.f32 %v327, 1.442695
    %v333 = vpow.pop %v332
    %v334 = vmul.f32 %v328, 1.442695
    %v335 = vpow.pop %v334
    %v336 = vmul.f32 %v329, 1.442695
    %v337 = vpow.pop %v336
    %vm338 = vcmp.lt.f32.partialorder %v77, %v331
    %vm339 = vcmp.lt.f32.partialorder %v78, %v333
    %vm340 = vcmp.lt.f32.partialorder %v79, %v335
    %vm341 = vcmp.lt.f32.partialorder %v80, %v337
    %v342 = vsel %vm338, 1, 0
    %v343 = vsel %vm339, 1, 0
    %v344 = vsel %vm340, 1, 0
    %v345 = vsel %vm341, 1, 0
    %346 = vset.pattern.permute.xlu0 2
    %347 = vperm.xlu0 %346, %v342
    %v348 = vpop.permute.xlu0 %347
    %349 = vset.pattern.permute.xlu0 2
    %350 = vperm.xlu0 %349, %v343
    %v351 = vpop.permute.xlu0 %350
    %352 = vset.pattern.permute.xlu0 2
    %353 = vperm.xlu0 %352, %v344
    %v354 = vpop.permute.xlu0 %353
    %355 = vset.pattern.permute.xlu0 2
    %356 = vperm.xlu0 %355, %v345
    %v357 = vpop.permute.xlu0 %356
    %vm358 = vcmp.eq.s32.totalorder %v348, 1
    %vm359 = vcmp.eq.s32.totalorder %v351, 1
    %vm360 = vcmp.eq.s32.totalorder %v354, 1
    %vm361 = vcmp.eq.s32.totalorder %v357, 1
    %v362 = vmul.f32 %v290, %v268
    %v363 = vmul.f32 %v291, %v269
    %v364 = vmul.f32 %v292, %v270
    %v365 = vmul.f32 %v293, %v271
    %v366 = vsel %vm358, %v362, %v268
    %v367 = vsel %vm359, %v363, %v269
    %v368 = vsel %vm360, %v364, %v270
    %v369 = vsel %vm361, %v365, %v271
    %v370 = vsel %vm358, %v306, %v272
    %v371 = vsel %vm359, %v307, %v273
    %v372 = vsel %vm360, %v308, %v274
    %v373 = vsel %vm361, %v309, %v275
    %s374 = scalar_lea.vmem %s2, 24
    %v375 = vld [vmem:[%s374] sm:$0xff]
    %v376 = vunpack.c.0.s8 %v375
    %v377 = vunpack.c.1.s8 %v375
    %v378 = vunpack.c.2.s8 %v375
    %v379 = vunpack.c.3.s8 %v375
    %v380 = vcvt.s32.f32 %v376
    %v381 = vcvt.s32.f32 %v377
    %v382 = vcvt.s32.f32 %v378
    %v383 = vcvt.s32.f32 %v379
    %vm384 = vcmp.gt.f32.partialorder %v380, 0.0
    %vm385 = vcmp.gt.f32.partialorder %v381, 0.0
    %vm386 = vcmp.gt.f32.partialorder %v382, 0.0
    %vm387 = vcmp.gt.f32.partialorder %v383, 0.0
    %v388 = vsel %vm384, 1.0, -1.0
    %v389 = vsel %vm385, 1.0, -1.0
    %v390 = vsel %vm386, 1.0, -1.0
    %v391 = vsel %vm387, 1.0, -1.0
    %v392 = vand.u32 2147483647, %v380
    %v393 = vand.u32 2147483647, %v381
    %v394 = vand.u32 2147483647, %v382
    %v395 = vand.u32 2147483647, %v383
    %v396 = vmul.f32 %v392, 2.0
    %v397 = vmul.f32 %v393, 2.0
    %v398 = vmul.f32 %v394, 2.0
    %v399 = vmul.f32 %v395, 2.0
    %v400 = vsub.f32 %v396, 3.0
    %v401 = vsub.f32 %v397, 3.0
    %v402 = vsub.f32 %v398, 3.0
    %v403 = vsub.f32 %v399, 3.0
    %v404 = vmul.f32 %v400, %v370
    %v405 = vmul.f32 %v401, %v371
    %v406 = vmul.f32 %v402, %v372
    %v407 = vmul.f32 %v403, %v373
    %v408 = vsub.f32 %v370, %v404
    %v409 = vsub.f32 %v371, %v405
    %v410 = vsub.f32 %v372, %v406
    %v411 = vsub.f32 %v373, %v407
    %412 = vadd.xlane.f32.xlu0 %v408
    %v413 = vpop.xlane.xlu0 %412
    %414 = vadd.xlane.f32.xlu0 %v409
    %v415 = vpop.xlane.xlu0 %414
    %416 = vadd.xlane.f32.xlu0 %v410
    %v417 = vpop.xlane.xlu0 %416
    %418 = vadd.xlane.f32.xlu0 %v411
    %v419 = vpop.xlane.xlu0 %418
    %v420 = vmax.f32 %v413, 0.0
    %v421 = vmax.f32 %v415, 0.0
    %v422 = vmax.f32 %v417, 0.0
    %v423 = vmax.f32 %v419, 0.0
    %v424 = vsub.f32 0.0, %v420
    %v425 = vsub.f32 0.0, %v421
    %v426 = vsub.f32 0.0, %v422
    %v427 = vsub.f32 0.0, %v423
    %v428 = vmul.f32 %v424, 1.442695
    %v429 = vpow.pop %v428
    %v430 = vmul.f32 %v425, 1.442695
    %v431 = vpow.pop %v430
    %v432 = vmul.f32 %v426, 1.442695
    %v433 = vpow.pop %v432
    %v434 = vmul.f32 %v427, 1.442695
    %v435 = vpow.pop %v434
    %vm436 = vcmp.lt.f32.partialorder %v77, %v429
    %vm437 = vcmp.lt.f32.partialorder %v78, %v431
    %vm438 = vcmp.lt.f32.partialorder %v79, %v433
    %vm439 = vcmp.lt.f32.partialorder %v80, %v435
    %v440 = vsel %vm436, 1, 0
    %v441 = vsel %vm437, 1, 0
    %v442 = vsel %vm438, 1, 0
    %v443 = vsel %vm439, 1, 0
    %444 = vset.pattern.permute.xlu0 3
    %445 = vperm.xlu0 %444, %v440
    %v446 = vpop.permute.xlu0 %445
    %447 = vset.pattern.permute.xlu0 3
    %448 = vperm.xlu0 %447, %v441
    %v449 = vpop.permute.xlu0 %448
    %450 = vset.pattern.permute.xlu0 3
    %451 = vperm.xlu0 %450, %v442
    %v452 = vpop.permute.xlu0 %451
    %453 = vset.pattern.permute.xlu0 3
    %454 = vperm.xlu0 %453, %v443
    %v455 = vpop.permute.xlu0 %454
    %vm456 = vcmp.eq.s32.totalorder %v446, 1
    %vm457 = vcmp.eq.s32.totalorder %v449, 1
    %vm458 = vcmp.eq.s32.totalorder %v452, 1
    %vm459 = vcmp.eq.s32.totalorder %v455, 1
    %v460 = vmul.f32 %v388, %v366
    %v461 = vmul.f32 %v389, %v367
    %v462 = vmul.f32 %v390, %v368
    %v463 = vmul.f32 %v391, %v369
    %v464 = vsel %vm456, %v460, %v366
    %v465 = vsel %vm457, %v461, %v367
    %v466 = vsel %vm458, %v462, %v368
    %v467 = vsel %vm459, %v463, %v369
    %468 = vst [vmem:[#allocation6] sm:$0xff] %v464
    %469 = vst [vmem:[#allocation6 + $0x8] sm:$0xff] %v465
    %470 = vst [vmem:[#allocation6 + $0x10] sm:$0xff] %v466
    %471 = vst [vmem:[#allocation6 + $0x18] sm:$0xff] %v467
    // Predicated region
    $region26: #{tpu_custom_call.1} parent=1 // pred_check
      _
    $region27: #{tpu_custom_call.1} parent=1 // pred_check_branch
      %473 = sbr.rel (0) target = $region29
    $region28: #{tpu_custom_call.1} parent=1 // pred_region
      %s475 = ssub.s32 512, 512
      %476 = vsyncadd [#allocation4], %s475
      %s477 = sshll.u32 [#allocation5], 4
      %s478 = int_to_ptr.vmem [resolvable:$true] %s477
      %483 = dma.vmem_to_hbm [thread:$0]  %s478, 512, %s5, [#allocation4], 128, 128, 8
    $region29: #{tpu_custom_call.1} parent=1 // pred_fallthru
      _
    // Predicated region
    $region30: #{tpu_custom_call.1} parent=1 // pred_check
      _
    $region31: #{tpu_custom_call.1} parent=1 // pred_check_branch
      %485 = sbr.rel (0) target = $region33
    $region32: #{tpu_custom_call.1} parent=1 // pred_region
      %s487 = ssub.s32 512, 512
      %488 = vsyncadd [#allocation7], %s487
      %s489 = sshll.u32 [#allocation6], 4
      %s490 = int_to_ptr.vmem [resolvable:$true] %s489
      %495 = dma.vmem_to_hbm [thread:$0]  %s490, 512, %s6, [#allocation7], 128, 128, 8
    $region33: #{tpu_custom_call.1} parent=1 // pred_fallthru
      _
    // Predicated region
    $region34: #{tpu_custom_call.1} parent=1 // pred_check
      _
    $region35: #{tpu_custom_call.1} parent=1 // pred_check_branch
      %497 = sbr.rel (0) target = $region37
    $region36: #{tpu_custom_call.1} parent=1 // pred_region
      %498 = dma.done [#allocation4], 512
    $region37: #{tpu_custom_call.1} parent=1 // pred_fallthru
      _
    // Predicated region
    $region38: #{tpu_custom_call.1} parent=1 // pred_check
      _
    $region39: #{tpu_custom_call.1} parent=1 // pred_check_branch
      %500 = sbr.rel (0) target = $region41
    $region40: #{tpu_custom_call.1} parent=1 // pred_region
      %501 = dma.done [#allocation7], 512
    $region41: #{tpu_custom_call.1} parent=1 // pred_fallthru
      _
    %502 = vsyncpa [#allocation3], 1
    %503 = vsyncpa [#allocation4], 1
    %504 = vsyncpa [#allocation7], 1

</llo_original>
